<compile_context>
chip_gen: v5e
topology: v5e:2x2
jax: 0.10.0
libtpu: 0.0.40
codegen_flags: <defaults>
</compile_context>

<pallas_src>
import jax
import jax.numpy as jnp
from jax.experimental import pallas as pl
from jax.experimental.pallas import tpu as pltpu


# ----------------------------------------------------------------------------- helpers

def _vmem_limit_bytes():
    """Generation-aware VMEM limit (3/4 of physical), with a safe fallback."""
    try:
        info = pltpu.get_tpu_info()
        phys = int(info.vmem_capacity_bytes)
        return max(32 * 1024 * 1024, (phys * 3) // 4)
    except Exception:
        return 48 * 1024 * 1024  # safe on v5e / v6e / v7x


def _sublane_unit(itemsize):
    """dtype-aware sublane granularity: f32 -> 8, bf16 -> 16, int8/fp8 -> 32."""
    if itemsize >= 4:
        return 8
    if itemsize == 2:
        return 16
    return 32


def _pick_tile(dim, unit, cap):
    """Power-of-two multiple of `unit` that divides `dim`, as large as possible <= cap."""
    t = unit
    while t * 2 <= min(dim, cap) and dim % (t * 2) == 0:
        t *= 2
    return t


def _activate(y, activation, slope):
    if activation == "leaky_relu":
        return jnp.where(y >= 0.0, y, slope * y)
    if activation == "relu":
        return jnp.maximum(y, 0.0)
    if activation == "elu":
        return jnp.where(y >= 0.0, y, jnp.exp(y) - 1.0)
    return y  # "none" / identity


# ----------------------------------------------------------------------------- tiling

def _fused_tile_c(N, C, L, itemsize, vmem_limit):
    """Channel tile for the fused single-pass kernel, or None if it can't fit."""
    unit = _sublane_unit(itemsize)
    budget = int(vmem_limit * 0.85)

    def fits(tc):
        x_blk = N * tc * L * itemsize        # one (N, tc, L) slab of x (== y)
        f32_ws = 4 * tc * L * 4              # acc, acc_sq, transient xi / yi (f32)
        # 2x double-buffered x in + 2x double-buffered y out + f32 working set
        return 4 * x_blk + f32_ws + (64 << 10) <= budget

    if C % unit != 0:
        return C if fits(C) else None

    cands = []
    t = unit
    while t <= C:
        if C % t == 0:
            cands.append(t)
        t *= 2
    fitting = [t for t in cands if fits(t)]
    if not fitting:
        return None
    # v7x megacore balance: prefer >= 2 channel tiles (the only grid axis) when C allows.
    two_tile = [t for t in fitting if C // t >= 2]
    return max(two_tile) if two_tile else max(fitting)


def _choose_tiles(N, C, L, itemsize, vmem_limit, with_scratch):
    """(TN, TC, TL) for the two-pass kernels; footprint includes scratch when asked."""
    unit = _sublane_unit(itemsize)
    budget = max(256 * 1024, int(vmem_limit * 0.6))

    # Channel tile (sublane axis).
    if C % unit == 0:
        tc_cap = 256
        if with_scratch and C >= 2 * unit:
            # Stats pass: only the C axis is "parallel" -> keep >= 2 channel tiles
            # so both v7x TensorCores get work.
            tc_cap = min(tc_cap, max(unit, C // 2))
        TC = _pick_tile(C, unit, tc_cap)
    else:
        TC = C

    def footprint(tn, tc, tl):
        x_blk = tn * tc * tl * itemsize
        f32 = tc * tl * 4
        if with_scratch:
            # 2x double-buffered x in + 2x f32 scratch + ~2x f32 register working set
            return 2 * x_blk + 4 * f32
        # 2x double-buffered x in + 2x double-buffered y out + f32 transient
        return 4 * x_blk + tn * f32

    # Lane tile: prefer growing TL (longer contiguous DMA rows) before TN.
    if L % 128 == 0:
        TL = 128
        while TL * 2 <= L and L % (TL * 2) == 0 and footprint(1, TC, TL * 2) <= budget:
            TL *= 2
    else:
        TL = L  # Mosaic requires the full dim when it isn't a multiple of 128

    # If even the minimal (TN=1) block overshoots the budget, shed channels.
    while (footprint(1, TC, TL) > budget and C % unit == 0 and TC > unit
           and (TC // 2) % unit == 0 and C % (TC // 2) == 0):
        TC //= 2
    # TODO(synk): if a single (unit, L) block still exceeds the budget for huge
    # non-128-multiple L, a padded-L path would be needed; not expected in practice.

    # Batch tile: only when the lane axis is exhausted and budget remains
    # (TN > 1 splits each block DMA into strided slabs).
    TN = 1
    if TL == L:
        cap_n = N if L < 128 else min(N, 8)
        while (TN * 2 <= cap_n and N % (TN * 2) == 0
               and footprint(TN * 2, TC, TL) <= budget):
            TN *= 2
    return TN, TC, TL


# ----------------------------------------------------------------------------- kernels

def _make_fused_kernel(eps, momentum, count, activation, slope):
    """Single-pass training kernel: stats + normalize + activation on one resident block."""
    inv_count = 1.0 / count
    denom = count - 1.0 if count > 1.0 else 1.0
    bessel = count / denom  # unbiased variance factor for the running-var update

    def kernel(x_ref, w_ref, b_ref, rm_ref, rv_ref, y_ref, nrm_ref, nrv_ref):
        n = x_ref.shape[0]
        tc, tl = x_ref.shape[1], x_ref.shape[2]

        # ---- per-channel sum / sum-of-squares over (N, L): elementwise adds in
        #      registers, then a single XLU cross-lane reduce per accumulator. ----
        if n <= 8:
            x0 = x_ref[0].astype(jnp.float32)
            acc, acc_sq = x0, x0 * x0
            for i in range(1, n):
                xi = x_ref[i].astype(jnp.float32)
                acc = acc + xi
                acc_sq = acc_sq + xi * xi
        else:
            def body(i, carry):
                a, asq = carry
                xi = x_ref[i].astype(jnp.float32)
                return a + xi, asq + xi * xi
            acc, acc_sq = jax.lax.fori_loop(
                0, n, body,
                (jnp.zeros((tc, tl), jnp.float32), jnp.zeros((tc, tl), jnp.float32)))

        s = jnp.sum(acc, axis=1, keepdims=True)        # (TC, 1)
        ss = jnp.sum(acc_sq, axis=1, keepdims=True)    # (TC, 1)
        mean = s * inv_count
        # Clamp: E[x^2]-E[x]^2 can go slightly negative in f32.
        var = jnp.maximum(ss * inv_count - mean * mean, 0.0)
        gamma = jnp.abs(w_ref[...]) + eps              # InPlaceABN's |gamma| + eps
        scale = jax.lax.rsqrt(var + eps) * gamma
        shift = b_ref[...] - mean * scale

        # ---- normalize + activation from the VMEM-resident block (no 2nd HBM read) ----
        if n <= 8:
            for i in range(n):
                yi = x_ref[i].astype(jnp.float32) * scale + shift
                y_ref[i] = _activate(yi, activation, slope).astype(y_ref.dtype)
        else:
            def wbody(i, carry):
                yi = x_ref[i].astype(jnp.float32) * scale + shift
                y_ref[i] = _activate(yi, activation, slope).astype(y_ref.dtype)
                return carry
            jax.lax.fori_loop(0, n, wbody, 0)

        nrm_ref[...] = (1.0 - momentum) * rm_ref[...] + momentum * mean
        nrv_ref[...] = (1.0 - momentum) * rv_ref[...] + momentum * (var * bessel)

    return kernel


def _make_stats_kernel(eps, momentum, count):
    """Two-pass fallback, pass 1: per-channel stats -> (scale, shift, new running stats)."""
    inv_count = 1.0 / count
    denom = count - 1.0 if count > 1.0 else 1.0
    bessel = count / denom

    def kernel(x_ref, w_ref, b_ref, rm_ref, rv_ref,
               scale_ref, shift_ref, nrm_ref, nrv_ref,
               sum_acc, sq_acc):
        n_id = pl.program_id(1)
        l_id = pl.program_id(2)

        @pl.when(jnp.logical_and(n_id == 0, l_id == 0))
        def _init():
            sum_acc[...] = jnp.zeros_like(sum_acc)
            sq_acc[...] = jnp.zeros_like(sq_acc)

        # Hot loop: build per-block partial sums in registers, then ONE
        # read-modify-write per scratch accumulator per grid step.
        tn = x_ref.shape[0]
        x0 = x_ref[0].astype(jnp.float32)              # (TC, TL)
        local = x0
        local_sq = x0 * x0
        for i in range(1, tn):
            xi = x_ref[i].astype(jnp.float32)
            local = local + xi
            local_sq = local_sq + xi * xi
        sum_acc[...] += local
        sq_acc[...] += local_sq

        @pl.when(jnp.logical_and(n_id == pl.num_programs(1) - 1,
                                 l_id == pl.num_programs(2) - 1))
        def _finalize():
            s = jnp.sum(sum_acc[...], axis=1, keepdims=True)    # (TC, 1)
            ss = jnp.sum(sq_acc[...], axis=1, keepdims=True)    # (TC, 1)
            mean = s * inv_count
            var = jnp.maximum(ss * inv_count - mean * mean, 0.0)
            gamma = jnp.abs(w_ref[...]) + eps
            scale = jax.lax.rsqrt(var + eps) * gamma
            scale_ref[...] = scale
            shift_ref[...] = b_ref[...] - mean * scale
            nrm_ref[...] = (1.0 - momentum) * rm_ref[...] + momentum * mean
            nrv_ref[...] = (1.0 - momentum) * rv_ref[...] + momentum * (var * bessel)

    return kernel


def _make_norm_kernel(activation, slope):
    """y = x * scale + shift, then activation.  scale/shift are per-channel (TC, 1)."""

    def kernel(x_ref, scale_ref, shift_ref, y_ref):
        x = x_ref[...].astype(jnp.float32)                 # (TN, TC, TL)
        y = x * scale_ref[...] + shift_ref[...]            # broadcast over N and lanes
        y_ref[...] = _activate(y, activation, slope).astype(y_ref.dtype)

    return kernel


# ----------------------------------------------------------------------------- wrapper

def inplace_abn_forward(x_nchw, weight, bias, running_mean, running_var,
                        training=True, momentum=0.1, eps=1e-5,
                        activation="leaky_relu", slope=0.01, in_place=False,
                        force_two_pass=False):
    """InPlaceABN forward.  Returns (y_nchw, new_running_mean, new_running_var)."""
    N, C, H, W = x_nchw.shape
    L = H * W
    count = float(N * L)

    # Free view (NCHW contiguous): spatial on the lane axis; no transposes.
    x3 = x_nchw.reshape(N, C, L)
    itemsize = jnp.dtype(x3.dtype).itemsize
    vmem_limit = _vmem_limit_bytes()

    # Per-channel parameters as (C, 1) f32 column vectors (tiny).
    w2 = weight.reshape(C, 1).astype(jnp.float32)
    b2 = bias.reshape(C, 1).astype(jnp.float32)
    rm2 = running_mean.reshape(C, 1).astype(jnp.float32)
    rv2 = running_var.reshape(C, 1).astype(jnp.float32)

    if training:
        tc_f = None if force_two_pass else _fused_tile_c(N, C, L, itemsize, vmem_limit)
        if tc_f is not None:
            # ---------------- fused single-pass fast path ----------------
            x_spec = pl.BlockSpec((N, tc_f, L), lambda c: (0, c, 0))
            cvec = pl.BlockSpec((tc_f, 1), lambda c: (c, 0))
            y3, nrm2, nrv2 = pl.pallas_call(
                _make_fused_kernel(float(eps), float(momentum), count,
                                   activation, float(slope)),
                grid=(C // tc_f,),
                in_specs=[x_spec, cvec, cvec, cvec, cvec],
                out_specs=(x_spec, cvec, cvec),
                out_shape=(jax.ShapeDtypeStruct((N, C, L), x3.dtype),
                           jax.ShapeDtypeStruct((C, 1), jnp.float32),
                           jax.ShapeDtypeStruct((C, 1), jnp.float32)),
                compiler_params=pltpu.CompilerParams(
                    dimension_semantics=("parallel",),
                    vmem_limit_bytes=vmem_limit),
                # In-place contract of InPlaceABN (requires the caller to donate x).
                input_output_aliases=({0: 0} if in_place else {}),
            )(x3, w2, b2, rm2, rv2)
            return (y3.reshape(N, C, H, W),
                    nrm2.reshape(C).astype(running_mean.dtype),
                    nrv2.reshape(C).astype(running_var.dtype))

        # ---------------- two-pass fallback: stats pass ----------------
        TN, TC, TL = _choose_tiles(N, C, L, itemsize, vmem_limit, with_scratch=True)
        grid = (C // TC, N // TN, L // TL)
        x_spec = pl.BlockSpec((TN, TC, TL), lambda c, n, l: (n, c, l))
        cvec = pl.BlockSpec((TC, 1), lambda c, n, l: (c, 0))
        scale2, shift2, nrm2, nrv2 = pl.pallas_call(
            _make_stats_kernel(float(eps), float(momentum), count),
            grid=grid,
            in_specs=[x_spec, cvec, cvec, cvec, cvec],
            out_specs=(cvec, cvec, cvec, cvec),
            out_shape=tuple(jax.ShapeDtypeStruct((C, 1), jnp.float32) for _ in range(4)),
            scratch_shapes=[pltpu.VMEM((TC, TL), jnp.float32),
                            pltpu.VMEM((TC, TL), jnp.float32)],
            compiler_params=pltpu.CompilerParams(
                dimension_semantics=("parallel", "arbitrary", "arbitrary"),
                vmem_limit_bytes=vmem_limit),
        )(x3, w2, b2, rm2, rv2)
        new_rm = nrm2.reshape(C).astype(running_mean.dtype)
        new_rv = nrv2.reshape(C).astype(running_var.dtype)
    else:
        # Eval: per-channel math is C elements of glue; running stats pass through.
        gamma = jnp.abs(w2) + eps
        scale2 = jax.lax.rsqrt(rv2 + eps) * gamma
        shift2 = b2 - rm2 * scale2
        new_rm = running_mean
        new_rv = running_var

    # ---------------- normalize pass (two-pass training & eval) ----------------
    TNn, TCn, TLn = _choose_tiles(N, C, L, itemsize, vmem_limit, with_scratch=False)
    gridn = (C // TCn, N // TNn, L // TLn)
    x_specn = pl.BlockSpec((TNn, TCn, TLn), lambda c, n, l: (n, c, l))
    cvecn = pl.BlockSpec((TCn, 1), lambda c, n, l: (c, 0))
    y3 = pl.pallas_call(
        _make_norm_kernel(activation, float(slope)),
        grid=gridn,
        in_specs=[x_specn, cvecn, cvecn],
        out_specs=x_specn,
        out_shape=jax.ShapeDtypeStruct((N, C, L), x3.dtype),
        compiler_params=pltpu.CompilerParams(
            dimension_semantics=("parallel", "parallel", "parallel"),
            vmem_limit_bytes=vmem_limit),
        input_output_aliases=({0: 0} if in_place else {}),
    )(x3, scale2, shift2)

    return y3.reshape(N, C, H, W), new_rm, new_rv


# ----------------------------------------------------------------------------- reference

def _reference(x_nchw, weight, bias, running_mean, running_var,
               training, momentum, eps, activation, slope):
    """Pure-JAX reference of the same semantics."""
    x = x_nchw.astype(jnp.float32)
    count = x.shape[0] * x.shape[2] * x.shape[3]
    if training:
        mean = jnp.mean(x, axis=(0, 2, 3))
        var = jnp.mean(x * x, axis=(0, 2, 3)) - mean * mean
        unbiased = var * count / max(count - 1, 1)
        new_rm = (1.0 - momentum) * running_mean + momentum * mean
        new_rv = (1.0 - momentum) * running_var + momentum * unbiased
    else:
        mean, var = running_mean, running_var
        new_rm, new_rv = running_mean, running_var
    gamma = jnp.abs(weight) + eps
    scale = (jax.lax.rsqrt(var + eps) * gamma)[None, :, None, None]
    y = (x - mean[None, :, None, None]) * scale + bias[None, :, None, None]
    y = _activate(y, activation, slope)
    return y, new_rm, new_rv


if __name__ == "__main__":
    key = jax.random.PRNGKey(0)
    N, C, H, W = 2, 4, 16, 16

    x = jax.random.normal(key, (N, C, H, W), dtype=jnp.float32) * 2.0 + 0.5

    # Parameters as in InPlaceABN.__init__ (affine=True) reset_parameters().
    weight = jnp.ones((C,), jnp.float32)
    bias = jnp.zeros((C,), jnp.float32)
    running_mean = jnp.zeros((C,), jnp.float32)
    running_var = jnp.ones((C,), jnp.float32)

    y_ref, nrm_ref, nrv_ref = _reference(
        x, weight, bias, running_mean, running_var,
        True, 0.1, 1e-5, "leaky_relu", 0.01)

    # Training mode -- fused single-pass path.
    y, nrm, nrv = inplace_abn_forward(
        x, weight, bias, running_mean, running_var,
        training=True, momentum=0.1, eps=1e-5,
        activation="leaky_relu", slope=0.01)
    jax.block_until_ready((y, nrm, nrv))
    assert jnp.allclose(y, y_ref, atol=1e-4, rtol=1e-4), "y mismatch (fused training)"
    assert jnp.allclose(nrm, nrm_ref, atol=1e-4, rtol=1e-4), "running_mean mismatch (fused)"
    assert jnp.allclose(nrv, nrv_ref, atol=1e-4, rtol=1e-4), "running_var mismatch (fused)"

    # Training mode -- forced two-pass fallback (stats + normalize kernels).
    y2, nrm2, nrv2 = inplace_abn_forward(
        x, weight, bias, running_mean, running_var,
        training=True, momentum=0.1, eps=1e-5,
        activation="leaky_relu", slope=0.01, force_two_pass=True)
    jax.block_until_ready((y2, nrm2, nrv2))
    assert jnp.allclose(y2, y_ref, atol=1e-4, rtol=1e-4), "y mismatch (two-pass training)"
    assert jnp.allclose(nrm2, nrm_ref, atol=1e-4, rtol=1e-4), "running_mean mismatch (two-pass)"
    assert jnp.allclose(nrv2, nrv_ref, atol=1e-4, rtol=1e-4), "running_var mismatch (two-pass)"

    # Eval mode.
    y_e, rm_e, rv_e = inplace_abn_forward(
        x, weight, bias, running_mean, running_var,
        training=False, momentum=0.1, eps=1e-5,
        activation="leaky_relu", slope=0.01)
    jax.block_until_ready(y_e)
    y_eref, _, _ = _reference(
        x, weight, bias, running_mean, running_var,
        False, 0.1, 1e-5, "leaky_relu", 0.01)
    assert jnp.allclose(y_e, y_eref, atol=1e-4, rtol=1e-4), "y mismatch (eval)"

    print("KERNEL_OK")
</pallas_src>

<mosaic_0001>
module attributes {stable_mosaic.version = 11 : i64} {
  func.func @kernel(%arg0: i32, %arg1: memref<2x4x256xf32, #tpu.memory_space<vmem>>, %arg2: memref<4x1xf32, #tpu.memory_space<vmem>>, %arg3: memref<4x1xf32, #tpu.memory_space<vmem>>, %arg4: memref<4x1xf32, #tpu.memory_space<vmem>>, %arg5: memref<4x1xf32, #tpu.memory_space<vmem>>, %arg6: memref<2x4x256xf32, #tpu.memory_space<vmem>>, %arg7: memref<4x1xf32, #tpu.memory_space<vmem>>, %arg8: memref<4x1xf32, #tpu.memory_space<vmem>>) attributes {dimension_semantics = [#tpu.dimension_semantics<parallel>], iteration_bounds = array<i64: 1>, scalar_prefetch = 0 : i64, scratch_operands = 0 : i64, tpu.core_type = #tpu.core_type<tc>, window_params = [{transform_indices = @transform_0, window_bounds = array<i64: 2, 4, 256>}, {transform_indices = @transform_1, window_bounds = array<i64: 4, 1>}, {transform_indices = @transform_2, window_bounds = array<i64: 4, 1>}, {transform_indices = @transform_3, window_bounds = array<i64: 4, 1>}, {transform_indices = @transform_4, window_bounds = array<i64: 4, 1>}, {transform_indices = @transform_5, window_bounds = array<i64: 2, 4, 256>}, {transform_indices = @transform_6, window_bounds = array<i64: 4, 1>}, {transform_indices = @transform_7, window_bounds = array<i64: 4, 1>}]} {
    %c0 = arith.constant 0 : index
    %c0_0 = arith.constant 0 : index
    %c0_1 = arith.constant 0 : index
    %0 = vector.load %arg1[%c0, %c0_0, %c0_1] : memref<2x4x256xf32, #tpu.memory_space<vmem>>, vector<1x4x256xf32>
    %1 = vector.shape_cast %0 : vector<1x4x256xf32> to vector<4x256xf32>
    %2 = arith.mulf %1, %1 : vector<4x256xf32>
    %c1 = arith.constant 1 : index
    %c0_2 = arith.constant 0 : index
    %c0_3 = arith.constant 0 : index
    %3 = vector.load %arg1[%c1, %c0_2, %c0_3] : memref<2x4x256xf32, #tpu.memory_space<vmem>>, vector<1x4x256xf32>
    %4 = vector.shape_cast %3 : vector<1x4x256xf32> to vector<4x256xf32>
    %5 = arith.addf %1, %4 : vector<4x256xf32>
    %6 = arith.mulf %4, %4 : vector<4x256xf32>
    %7 = arith.addf %2, %6 : vector<4x256xf32>
    %cst = arith.constant dense<0.000000e+00> : vector<4xf32>
    %8 = vector.multi_reduction <add>, %5, %cst [1] : vector<4x256xf32> to vector<4xf32>
    %9 = vector.shape_cast %8 : vector<4xf32> to vector<4x1xf32>
    %cst_4 = arith.constant dense<0.000000e+00> : vector<4xf32>
    %10 = vector.multi_reduction <add>, %7, %cst_4 [1] : vector<4x256xf32> to vector<4xf32>
    %11 = vector.shape_cast %10 : vector<4xf32> to vector<4x1xf32>
    %cst_5 = arith.constant 0.001953125 : f32
    %12 = vector.broadcast %cst_5 : f32 to vector<4x1xf32>
    %13 = arith.mulf %9, %12 : vector<4x1xf32>
    %cst_6 = arith.constant 0.001953125 : f32
    %14 = vector.broadcast %cst_6 : f32 to vector<4x1xf32>
    %15 = arith.mulf %11, %14 : vector<4x1xf32>
    %16 = arith.mulf %13, %13 : vector<4x1xf32>
    %17 = arith.subf %15, %16 : vector<4x1xf32>
    %cst_7 = arith.constant 0.000000e+00 : f32
    %18 = vector.broadcast %cst_7 : f32 to vector<4x1xf32>
    %19 = arith.maximumf %17, %18 : vector<4x1xf32>
    %c0_8 = arith.constant 0 : index
    %c0_9 = arith.constant 0 : index
    %20 = vector.load %arg2[%c0_8, %c0_9] : memref<4x1xf32, #tpu.memory_space<vmem>>, vector<4x1xf32>
    %21 = math.absf %20 : vector<4x1xf32>
    %cst_10 = arith.constant 9.99999974E-6 : f32
    %22 = vector.broadcast %cst_10 : f32 to vector<4x1xf32>
    %23 = arith.addf %21, %22 : vector<4x1xf32>
    %cst_11 = arith.constant 9.99999974E-6 : f32
    %24 = vector.broadcast %cst_11 : f32 to vector<4x1xf32>
    %25 = arith.addf %19, %24 : vector<4x1xf32>
    %26 = math.rsqrt %25 : vector<4x1xf32>
    %27 = arith.mulf %26, %23 : vector<4x1xf32>
    %c0_12 = arith.constant 0 : index
    %c0_13 = arith.constant 0 : index
    %28 = vector.load %arg3[%c0_12, %c0_13] : memref<4x1xf32, #tpu.memory_space<vmem>>, vector<4x1xf32>
    %29 = arith.mulf %13, %27 : vector<4x1xf32>
    %30 = arith.subf %28, %29 : vector<4x1xf32>
    %c0_14 = arith.constant 0 : index
    %c0_15 = arith.constant 0 : index
    %c0_16 = arith.constant 0 : index
    %31 = vector.load %arg1[%c0_14, %c0_15, %c0_16] : memref<2x4x256xf32, #tpu.memory_space<vmem>>, vector<1x4x256xf32>
    %32 = vector.shape_cast %31 : vector<1x4x256xf32> to vector<4x256xf32>
    %33 = vector.broadcast %27 : vector<4x1xf32> to vector<4x256xf32>
    %34 = arith.mulf %32, %33 : vector<4x256xf32>
    %35 = vector.broadcast %30 : vector<4x1xf32> to vector<4x256xf32>
    %36 = arith.addf %34, %35 : vector<4x256xf32>
    %cst_17 = arith.constant 0.000000e+00 : f32
    %37 = vector.broadcast %cst_17 : f32 to vector<4x256xf32>
    %38 = arith.cmpf oge, %36, %37 : vector<4x256xf32>
    %cst_18 = arith.constant 0.00999999977 : f32
    %39 = vector.broadcast %cst_18 : f32 to vector<4x256xf32>
    %40 = arith.mulf %39, %36 : vector<4x256xf32>
    %41 = arith.select %38, %36, %40 : vector<4x256xi1>, vector<4x256xf32>
    %c0_19 = arith.constant 0 : index
    %c0_20 = arith.constant 0 : index
    %c0_21 = arith.constant 0 : index
    %42 = vector.load %arg6[%c0_19, %c0_20, %c0_21] : memref<2x4x256xf32, #tpu.memory_space<vmem>>, vector<1x4x256xf32>
    %43 = vector.shape_cast %42 : vector<1x4x256xf32> to vector<4x256xf32>
    %44 = vector.shape_cast %41 : vector<4x256xf32> to vector<1x4x256xf32>
    tpu.vector_store %arg6[%c0_19, %c0_20, %c0_21], %44 {strides = array<i32>} : memref<2x4x256xf32, #tpu.memory_space<vmem>>, vector<1x4x256xf32>,
    %c1_22 = arith.constant 1 : index
    %c0_23 = arith.constant 0 : index
    %c0_24 = arith.constant 0 : index
    %45 = vector.load %arg1[%c1_22, %c0_23, %c0_24] : memref<2x4x256xf32, #tpu.memory_space<vmem>>, vector<1x4x256xf32>
    %46 = vector.shape_cast %45 : vector<1x4x256xf32> to vector<4x256xf32>
    %47 = vector.broadcast %27 : vector<4x1xf32> to vector<4x256xf32>
    %48 = arith.mulf %46, %47 : vector<4x256xf32>
    %49 = vector.broadcast %30 : vector<4x1xf32> to vector<4x256xf32>
    %50 = arith.addf %48, %49 : vector<4x256xf32>
    %cst_25 = arith.constant 0.000000e+00 : f32
    %51 = vector.broadcast %cst_25 : f32 to vector<4x256xf32>
    %52 = arith.cmpf oge, %50, %51 : vector<4x256xf32>
    %cst_26 = arith.constant 0.00999999977 : f32
    %53 = vector.broadcast %cst_26 : f32 to vector<4x256xf32>
    %54 = arith.mulf %53, %50 : vector<4x256xf32>
    %55 = arith.select %52, %50, %54 : vector<4x256xi1>, vector<4x256xf32>
    %c1_27 = arith.constant 1 : index
    %c0_28 = arith.constant 0 : index
    %c0_29 = arith.constant 0 : index
    %56 = vector.load %arg6[%c1_27, %c0_28, %c0_29] : memref<2x4x256xf32, #tpu.memory_space<vmem>>, vector<1x4x256xf32>
    %57 = vector.shape_cast %56 : vector<1x4x256xf32> to vector<4x256xf32>
    %58 = vector.shape_cast %55 : vector<4x256xf32> to vector<1x4x256xf32>
    tpu.vector_store %arg6[%c1_27, %c0_28, %c0_29], %58 {strides = array<i32>} : memref<2x4x256xf32, #tpu.memory_space<vmem>>, vector<1x4x256xf32>,
    %c0_30 = arith.constant 0 : index
    %c0_31 = arith.constant 0 : index
    %59 = vector.load %arg4[%c0_30, %c0_31] : memref<4x1xf32, #tpu.memory_space<vmem>>, vector<4x1xf32>
    %cst_32 = arith.constant 0.899999976 : f32
    %60 = vector.broadcast %cst_32 : f32 to vector<4x1xf32>
    %61 = arith.mulf %60, %59 : vector<4x1xf32>
    %cst_33 = arith.constant 1.000000e-01 : f32
    %62 = vector.broadcast %cst_33 : f32 to vector<4x1xf32>
    %63 = arith.mulf %62, %13 : vector<4x1xf32>
    %64 = arith.addf %61, %63 : vector<4x1xf32>
    %c0_34 = arith.constant 0 : index
    %c0_35 = arith.constant 0 : index
    %65 = vector.load %arg7[%c0_34, %c0_35] : memref<4x1xf32, #tpu.memory_space<vmem>>, vector<4x1xf32>
    tpu.vector_store %arg7[%c0_34, %c0_35], %64 {strides = array<i32>} : memref<4x1xf32, #tpu.memory_space<vmem>>, vector<4x1xf32>,
    %c0_36 = arith.constant 0 : index
    %c0_37 = arith.constant 0 : index
    %66 = vector.load %arg5[%c0_36, %c0_37] : memref<4x1xf32, #tpu.memory_space<vmem>>, vector<4x1xf32>
    %cst_38 = arith.constant 0.899999976 : f32
    %67 = vector.broadcast %cst_38 : f32 to vector<4x1xf32>
    %68 = arith.mulf %67, %66 : vector<4x1xf32>
    %cst_39 = arith.constant 1.00195694 : f32
    %69 = vector.broadcast %cst_39 : f32 to vector<4x1xf32>
    %70 = arith.mulf %19, %69 : vector<4x1xf32>
    %cst_40 = arith.constant 1.000000e-01 : f32
    %71 = vector.broadcast %cst_40 : f32 to vector<4x1xf32>
    %72 = arith.mulf %71, %70 : vector<4x1xf32>
    %73 = arith.addf %68, %72 : vector<4x1xf32>
    %c0_41 = arith.constant 0 : index
    %c0_42 = arith.constant 0 : index
    %74 = vector.load %arg8[%c0_41, %c0_42] : memref<4x1xf32, #tpu.memory_space<vmem>>, vector<4x1xf32>
    tpu.vector_store %arg8[%c0_41, %c0_42], %73 {strides = array<i32>} : memref<4x1xf32, #tpu.memory_space<vmem>>, vector<4x1xf32>,
    return
  }
  func.func @transform_0(%arg0: i32) -> (i32, i32, i32) {
    %c0_i32 = arith.constant 0 : i32
    %c0_i32_0 = arith.constant 0 : i32
    %c0_i32_1 = arith.constant 0 : i32
    return %c0_i32, %arg0, %c0_i32_0 : i32, i32, i32
  }
  func.func @transform_1(%arg0: i32) -> (i32, i32) {
    %c0_i32 = arith.constant 0 : i32
    %c0_i32_0 = arith.constant 0 : i32
    return %arg0, %c0_i32 : i32, i32
  }
  func.func @transform_2(%arg0: i32) -> (i32, i32) {
    %c0_i32 = arith.constant 0 : i32
    %c0_i32_0 = arith.constant 0 : i32
    return %arg0, %c0_i32 : i32, i32
  }
  func.func @transform_3(%arg0: i32) -> (i32, i32) {
    %c0_i32 = arith.constant 0 : i32
    %c0_i32_0 = arith.constant 0 : i32
    return %arg0, %c0_i32 : i32, i32
  }
  func.func @transform_4(%arg0: i32) -> (i32, i32) {
    %c0_i32 = arith.constant 0 : i32
    %c0_i32_0 = arith.constant 0 : i32
    return %arg0, %c0_i32 : i32, i32
  }
  func.func @transform_5(%arg0: i32) -> (i32, i32, i32) {
    %c0_i32 = arith.constant 0 : i32
    %c0_i32_0 = arith.constant 0 : i32
    %c0_i32_1 = arith.constant 0 : i32
    return %c0_i32, %arg0, %c0_i32_0 : i32, i32, i32
  }
  func.func @transform_6(%arg0: i32) -> (i32, i32) {
    %c0_i32 = arith.constant 0 : i32
    %c0_i32_0 = arith.constant 0 : i32
    return %arg0, %c0_i32 : i32, i32
  }
  func.func @transform_7(%arg0: i32) -> (i32, i32) {
    %c0_i32 = arith.constant 0 : i32
    %c0_i32_0 = arith.constant 0 : i32
    return %arg0, %c0_i32 : i32, i32
  }
}

</mosaic_0001>

<llo_original>
// kernel: tpu_custom_call.1
$region0: #{tpu_custom_call.1}
  #allocation0 [shape = 'u32[]', space=smem, size = 0x4, offset = 0x4, fixed_abs, tag = 'smem constant byte address 0x4 - core index']
  #allocation1 [shape = 'u32[72,128]{1,0:T(1,128)}', space=vmem, size = 0x9000, scoped, tag = 'internal scratch']
  %s0 = inlined_call_operand.hbm [shape: f32[2,4,256], index: 0, kind: input, shape index: {}]
  %s1 = inlined_call_operand.vmem [shape: f32[4,1], index: 1, kind: input, shape index: {}]
  %s2 = inlined_call_operand.vmem [shape: f32[4,1], index: 2, kind: input, shape index: {}]
  %s3 = inlined_call_operand.vmem [shape: f32[4,1], index: 3, kind: input, shape index: {}]
  %s4 = inlined_call_operand.vmem [shape: f32[4,1], index: 4, kind: input, shape index: {}]
  %s5 = inlined_call_operand.hbm [shape: f32[2,4,256], index: 5, kind: output, shape index: {0}]
  %s6 = inlined_call_operand.vmem [shape: f32[4,1], index: 6, kind: output, shape index: {1}]
  %s7 = inlined_call_operand.vmem [shape: f32[4,1], index: 7, kind: output, shape index: {2}]
  %8 = xla_tuple %s5, %s6, %s7
  %s9 = sld [smem:[#allocation0]]
  $region50: #{tpu_custom_call.1} parent=0
    _
  %s11 = ssub.s32 1, %s9
  %s12 = scalar_select 0, %s11, %s9
  $region1: #{tpu_custom_call.1} parent=0
    #allocation2 [shape = 'u8[8192]{0}', space=vmem, size = 0x2000, scoped, tag = 'input window, operand 0, single buffered']
    #allocation3 [shape = 's32[1]{0}', space=sflag, size = 0x4, scoped, tag = 'scoped memory for tpu_custom_call.1']
    #allocation4 [shape = 's32[1]{0}', space=sflag, size = 0x4, scoped, tag = 'scoped memory for tpu_custom_call.1']
    #allocation5 [shape = 'u8[8192]{0}', space=vmem, size = 0x2000, scoped, tag = 'output window, operand 0, single buffered']
    %13 = vsyncpa [#allocation3], 0
    %14 = vsyncpa [#allocation4], 0
    // Predicated region
    $region2: #{tpu_custom_call.1} parent=1 // pred_check
      _
    $region3: #{tpu_custom_call.1} parent=1 // pred_check_branch
      %16 = sbr.rel (0) target = $region5
    $region4: #{tpu_custom_call.1} parent=1 // pred_region
      %18 = vsyncadd [#allocation3], 0
      %s19 = sshll.u32 %s0, 4
      %s20 = int_to_ptr.hbm [resolvable:$true] %s19
      %s21 = sshll.u32 [#allocation2], 4
      %s22 = int_to_ptr.vmem [resolvable:$true] %s21
      %27 = dma.hbm_to_vmem [thread:$0]  %s20, 256, %s22, [#allocation3], 128, 128, 8
    $region5: #{tpu_custom_call.1} parent=1 // pred_fallthru
      _
    // Predicated region
    $region6: #{tpu_custom_call.1} parent=1 // pred_check
      _
    $region7: #{tpu_custom_call.1} parent=1 // pred_check_branch
      %29 = sbr.rel (0) target = $region9
    $region8: #{tpu_custom_call.1} parent=1 // pred_region
      _
    $region9: #{tpu_custom_call.1} parent=1 // pred_fallthru
      _
    // Predicated region
    $region10: #{tpu_custom_call.1} parent=1 // pred_check
      _
    $region11: #{tpu_custom_call.1} parent=1 // pred_check_branch
      %31 = sbr.rel (0) target = $region13
    $region12: #{tpu_custom_call.1} parent=1 // pred_region
      _
    $region13: #{tpu_custom_call.1} parent=1 // pred_fallthru
      _
    // Predicated region
    $region14: #{tpu_custom_call.1} parent=1 // pred_check
      _
    $region15: #{tpu_custom_call.1} parent=1 // pred_check_branch
      %33 = sbr.rel (0) target = $region17
    $region16: #{tpu_custom_call.1} parent=1 // pred_region
      _
    $region17: #{tpu_custom_call.1} parent=1 // pred_fallthru
      _
    // Predicated region
    $region18: #{tpu_custom_call.1} parent=1 // pred_check
      _
    $region19: #{tpu_custom_call.1} parent=1 // pred_check_branch
      %35 = sbr.rel (0) target = $region21
    $region20: #{tpu_custom_call.1} parent=1 // pred_region
      _
    $region21: #{tpu_custom_call.1} parent=1 // pred_fallthru
      _
    // Predicated region
    $region22: #{tpu_custom_call.1} parent=1 // pred_check
      _
    $region23: #{tpu_custom_call.1} parent=1 // pred_check_branch
      %37 = sbr.rel (0) target = $region25
    $region24: #{tpu_custom_call.1} parent=1 // pred_region
      %39 = dma.done [#allocation3], 256
    $region25: #{tpu_custom_call.1} parent=1 // pred_fallthru
      _
    %v40 = vld [vmem:[#allocation2] sm:$0xff]
    %v41 = vmul.f32 %v40, %v40
    %s42 = scalar_lea.vmem [#allocation2], 8
    %v43 = vld [vmem:[%s42] sm:$0xff]
    %v44 = vadd.f32 %v40, %v43
    %v45 = vmul.f32 %v43, %v43
    %v46 = vadd.f32 %v41, %v45
    %48 = vst [vmem:[#allocation1] ss:$2 sm:$0xff] %v44
    %v49 = vld.sshfl [vmem:[#allocation1] sm:$0xff pattern:$0x75316420]
    %v50 = vld.sshfl [vmem:[#allocation1 + $0x8] sm:$0xff pattern:$0x75316420]
    %vm53 = vcmask 1043456
    %v54 = vsel %vm53, %v49, 0.0
    %v55 = vsel %vm53, %v50, 0.0
    %v56 = vadd.f32 %v54, %v55
    %57 = vadd.xlane.f32.xlu0 %v56
    %v58 = vpop.xlane.xlu0 %57
    %60 = vst [vmem:[#allocation1] ss:$2 sm:$0xff] %v46
    %v61 = vld.sshfl [vmem:[#allocation1] sm:$0xff pattern:$0x75316420]
    %v62 = vld.sshfl [vmem:[#allocation1 + $0x8] sm:$0xff pattern:$0x75316420]
    %v65 = vsel %vm53, %v61, 0.0
    %v66 = vsel %vm53, %v62, 0.0
    %v67 = vadd.f32 %v65, %v66
    %68 = vadd.xlane.f32.xlu0 %v67
    %v69 = vpop.xlane.xlu0 %68
    %v70 = vmul.f32 %v58, 0.001953125
    %v71 = vmul.f32 %v69, 0.001953125
    %v72 = vmul.f32 %v70, %v70
    %v73 = vsub.f32 %v71, %v72
    %v74 = vmax.f32 %v73, 0.0
    %v75 = vld [vmem:[%s1] sm:$0xf]
    %v76 = vand.u32 2147483647, %v75
    %v77 = vadd.f32 %v76, 1e-05
    %v78 = vadd.f32 %v74, 1e-05
    %v79 = vrsqrt.pop %v78
    %v80 = vmul.f32 %v79, %v78
    %v81 = vmul.f32 %v80, %v79
    %v82 = vmul.f32 0.5, %v81
    %v83 = vsub.f32 1.5, %v82
    %v84 = vmul.f32 %v79, %v83
    %vm85 = vweird.f32 %v78
    %vm86 = vweird.f32 %v79
    %vm87 = vmor %vm85, %vm86
    %v88 = vsel %vm87, %v79, %v84
    %v89 = vmul.f32 %v88, %v77
    %v90 = vld [vmem:[%s2] sm:$0xf]
    %v91 = vmul.f32 %v70, %v89
    %v92 = vsub.f32 %v90, %v91
    %94 = vset.pattern.permute.xlu0 0
    %95 = vperm.xlu0 %94, %v89
    %v96 = vpop.permute.xlu0 %95
    %v98 = vunpack.c.l.s4 839922192
    %v99 = vunpack.c.0.s8 %v98
    %v100 = vperm.slane %v96, %v99
    %v102 = vmul.f32 %v40, %v100
    %104 = vset.pattern.permute.xlu0 0
    %105 = vperm.xlu0 %104, %v92
    %v106 = vpop.permute.xlu0 %105
    %v108 = vunpack.c.l.s4 839922192
    %v109 = vunpack.c.0.s8 %v108
    %v110 = vperm.slane %v106, %v109
    %v112 = vadd.f32 %v102, %v110
    %vm113 = vcmp.ge.f32.partialorder %v112, 0.0
    %v114 = vmul.f32 %v112, 0.01
    %v115 = vsel %vm113, %v112, %v114
    %116 = vst [vmem:[#allocation5] sm:$0xff] %v115
    %v117 = vld [vmem:[%s42] sm:$0xff]
    %v118 = vmul.f32 %v117, %v100
    %v119 = vadd.f32 %v118, %v110
    %vm120 = vcmp.ge.f32.partialorder %v119, 0.0
    %v121 = vmul.f32 %v119, 0.01
    %v122 = vsel %vm120, %v119, %v121
    %s123 = scalar_lea.vmem [#allocation5], 8
    %124 = vst [vmem:[%s123] sm:$0xff] %v122
    %v125 = vld [vmem:[%s3] sm:$0xf]
    %v126 = vmul.f32 %v125, 0.9
    %v127 = vmul.f32 %v70, 0.1
    %v128 = vadd.f32 %v126, %v127
    %vm129 = vcmask 3072
    %130 = vst.msk [vmem:[%s6] sm:$0xf] %vm129, %v128
    %v131 = vld [vmem:[%s4] sm:$0xf]
    %v132 = vmul.f32 %v131, 0.9
    %v133 = vmul.f32 %v74, 1.0019569
    %v134 = vmul.f32 %v133, 0.1
    %v135 = vadd.f32 %v132, %v134
    %136 = vst.msk [vmem:[%s7] sm:$0xf] %vm129, %v135
    // Predicated region
    $region26: #{tpu_custom_call.1} parent=1 // pred_check
      _
    $region27: #{tpu_custom_call.1} parent=1 // pred_check_branch
      %138 = sbr.rel (0) target = $region29
    $region28: #{tpu_custom_call.1} parent=1 // pred_region
      %140 = vsyncadd [#allocation4], 0
      %s141 = sshll.u32 [#allocation5], 4
      %s142 = int_to_ptr.vmem [resolvable:$true] %s141
      %s143 = sshll.u32 %s5, 4
      %s144 = int_to_ptr.hbm [resolvable:$true] %s143
      %149 = dma.vmem_to_hbm [thread:$0]  %s142, 256, %s144, [#allocation4], 128, 128, 8
    $region29: #{tpu_custom_call.1} parent=1 // pred_fallthru
      _
    // Predicated region
    $region30: #{tpu_custom_call.1} parent=1 // pred_check
      _
    $region31: #{tpu_custom_call.1} parent=1 // pred_check_branch
      %151 = sbr.rel (0) target = $region33
    $region32: #{tpu_custom_call.1} parent=1 // pred_region
      _
    $region33: #{tpu_custom_call.1} parent=1 // pred_fallthru
      _
    // Predicated region
    $region34: #{tpu_custom_call.1} parent=1 // pred_check
      _
    $region35: #{tpu_custom_call.1} parent=1 // pred_check_branch
      %153 = sbr.rel (0) target = $region37
    $region36: #{tpu_custom_call.1} parent=1 // pred_region
      _
    $region37: #{tpu_custom_call.1} parent=1 // pred_fallthru
      _
    // Predicated region
    $region38: #{tpu_custom_call.1} parent=1 // pred_check
      _
    $region39: #{tpu_custom_call.1} parent=1 // pred_check_branch
      %155 = sbr.rel (0) target = $region41
    $region40: #{tpu_custom_call.1} parent=1 // pred_region
      %157 = dma.done [#allocation4], 256
    $region41: #{tpu_custom_call.1} parent=1 // pred_fallthru
      _
    // Predicated region
    $region42: #{tpu_custom_call.1} parent=1 // pred_check
      _
    $region43: #{tpu_custom_call.1} parent=1 // pred_check_branch
      %159 = sbr.rel (0) target = $region45
    $region44: #{tpu_custom_call.1} parent=1 // pred_region
      _
    $region45: #{tpu_custom_call.1} parent=1 // pred_fallthru
      _
    // Predicated region
    $region46: #{tpu_custom_call.1} parent=1 // pred_check
      _
    $region47: #{tpu_custom_call.1} parent=1 // pred_check_branch
      %161 = sbr.rel (0) target = $region49
    $region48: #{tpu_custom_call.1} parent=1 // pred_region
      _
    $region49: #{tpu_custom_call.1} parent=1 // pred_fallthru
      _
    %162 = vsyncpa [#allocation3], 1
    %163 = vsyncpa [#allocation4], 1

</llo_original>
